<compile_context>
chip_gen: v6e
topology: v6e:2x2x1
jax: 0.10.0
libtpu: 0.0.40
codegen_flags: <defaults>
</compile_context>

<pallas_src>
import functools
import math

import jax
import jax.numpy as jnp
from jax import lax
from jax.experimental import pallas as pl
from jax.experimental.pallas import tpu as pltpu


def _round_up(x, m):
    return -(-x // m) * m


@functools.partial(jax.jit, static_argnames=("stride", "padding", "dilation"))
def robust_conv2d(x, weight, *, stride=1, padding=0, dilation=1):
    """Forward of RobustLearnConv2d (L2 / K=1 / N=1 robust sum == conv, no bias).

    x      : (B, C, H, W)   float32
    weight : (O, C, kh, kw) float32
    returns: (B, O, out_h, out_w) float32
    """
    B, C, H, W = x.shape
    O, C2, kh, kw = weight.shape
    assert C2 == C
    d = dilation
    assert stride >= 1 and padding >= 0 and d >= 1

    # Stride-1 output extent; stride > 1 handled by subsampling at the end.
    out_h = H + 2 * padding - d * (kh - 1)
    out_w = W + 2 * padding - d * (kw - 1)
    assert out_h >= 1 and out_w >= 1

    # ---- flattened-spatial layout ----
    Wp = W + 2 * padding                       # row pitch (unrounded: less waste)
    Lout = out_h * Wp                          # flat output length (pre-pad)
    Lout_pad = _round_up(Lout, 128)            # lane-dense output tile
    off_max = d * ((kh - 1) * Wp + (kw - 1))   # largest tap offset
    Lin_need = Lout_pad + off_max              # flat input length the taps read
    Hp = -(-Lin_need // Wp)                    # padded input rows to cover it
    Lin = Hp * Wp
    Kc = kh * kw * C                           # folded MXU contraction length
    O_pad = _round_up(O, 8)

    # Output-channel tile (second grid axis) for production channel counts.
    tO = O_pad
    if O_pad > 256:
        for cand in (256, 128, 64, 32, 16, 8):
            if O_pad % cand == 0:
                tO = cand
                break
    n_ot = O_pad // tO

    # ---- host-side operand prep (single pad+cast fusion, no halos array) ----
    pad_bot = Hp - H - padding
    assert pad_bot >= 0
    xp = jnp.pad(x, ((0, 0), (0, 0), (padding, pad_bot), (padding, padding)))
    x_flat = xp.astype(jnp.bfloat16).reshape(B, C, Lin)

    # Weight as (O_pad, kh*kw*C) with K index ordered (i, j, c) to match the
    # patch slab built in the kernel.
    w2 = jnp.transpose(weight, (0, 2, 3, 1)).reshape(O, Kc)
    w2 = jnp.pad(w2, ((0, O_pad - O), (0, 0))).astype(jnp.bfloat16)

    # ---- VMEM budget (whole-image mode) & cost hint ----
    vmem_need = (2 * C * Lin * 2 + 2 * O_pad * Kc * 2 + 2 * tO * Lout_pad * 4
                 + Kc * Lout_pad * 2 + (1 << 20))
    assert vmem_need <= 40 * (1 << 20), "image too large for whole-image tiling"
    vmem_limit = int(min(max(2 * vmem_need, 32 * (1 << 20)), 48 * (1 << 20)))

    flops = 2 * B * O * C * kh * kw * out_h * out_w
    bytes_accessed = B * C * Lin * 2 + O_pad * Kc * 2 + B * O_pad * Lout_pad * 4

    # ---------------------------- Pallas kernel ----------------------------
    def kernel(w_ref, x_ref, o_ref, patch_ref):
        # Build the (kh*kw*C, Lout_pad) im2col slab once per image.  The input
        # block is resident across the O-tile axis (constant block index), so
        # this runs only at ot == 0; the ot axis is "arbitrary" (sequential).
        @pl.when(pl.program_id(1) == 0)
        def _():
            for i in range(kh):
                for j in range(kw):
                    t = i * kw + j
                    off = d * (i * Wp + j)
                    patch_ref[t * C:(t + 1) * C, :] = \
                        x_ref[0, :, off:off + Lout_pad]

        # One MXU matmul per step: (tO, kh*kw*C) @ (kh*kw*C, Lout_pad),
        # bf16 operands, f32 accumulation, result straight to the output ref.
        o_ref[0] = jnp.dot(w_ref[...], patch_ref[...],
                           preferred_element_type=jnp.float32).astype(o_ref.dtype)

    out_flat = pl.pallas_call(
        kernel,
        out_shape=jax.ShapeDtypeStruct((B, O_pad, Lout_pad), jnp.float32),
        grid_spec=pltpu.PrefetchScalarGridSpec(
            num_scalar_prefetch=0,
            grid=(B, n_ot),
            in_specs=[
                # Weight tile for this O-tile (whole weight when n_ot == 1).
                pl.BlockSpec((tO, Kc), lambda b, t: (t, 0)),
                # Whole flattened padded image; constant across the O-tile
                # axis -> DMA'd once per batch element, then resident.
                pl.BlockSpec((1, C, Lin), lambda b, t: (b, 0, 0)),
            ],
            out_specs=pl.BlockSpec((1, tO, Lout_pad), lambda b, t: (b, t, 0)),
            scratch_shapes=[pltpu.VMEM((Kc, Lout_pad), jnp.bfloat16)],
        ),
        compiler_params=pltpu.CompilerParams(
            dimension_semantics=("parallel", "arbitrary"),
            vmem_limit_bytes=vmem_limit,
        ),
        cost_estimate=pl.CostEstimate(flops=flops, transcendentals=0,
                                      bytes_accessed=bytes_accessed),
    )(w2, x_flat)

    # Un-flatten, drop channel/row/column padding, apply stride by subsampling.
    out = out_flat[:, :O, :Lout].reshape(B, O, out_h, Wp)[:, :, :, :out_w]
    if stride > 1:
        out = out[:, :, ::stride, ::stride]
    return out


class RobustLearnConv2dPallas:
    """JAX/Pallas equivalent of RobustLearnConv2d (forward only).

    With RobustSumLearn(K=1, norm='L2', N=1) the robust sum is exactly
    matmul(weight_unfold, input_unfold); bias is a parameter of the PyTorch
    module but is never added in its forward, so neither is it here.
    """

    def __init__(self, in_channels, out_channels, kernel_size, stride=1,
                 padding=0, dilation=1, groups=1, bias=True, key=None):
        assert groups == 1, "reference forward only supports groups == 1"
        self.stride, self.padding, self.dilation = stride, padding, dilation
        key = jax.random.PRNGKey(42) if key is None else key
        kw_, kb_ = jax.random.split(key)
        fan_in = in_channels * kernel_size * kernel_size
        bound = 1.0 / math.sqrt(fan_in)            # kaiming_uniform(a=sqrt(5))
        self.weight = jax.random.uniform(
            kw_, (out_channels, in_channels, kernel_size, kernel_size),
            minval=-bound, maxval=bound, dtype=jnp.float32)
        # Initialized like the PyTorch module but (matching its forward) unused.
        self.bias = jax.random.uniform(
            kb_, (out_channels,), minval=-bound, maxval=bound,
            dtype=jnp.float32) if bias else None
        # RobustSumLearn.beta: unused on the L2 path.
        self.beta = jnp.zeros((1,), jnp.float32)

    def __call__(self, x):
        return robust_conv2d(x, self.weight, stride=self.stride,
                             padding=self.padding, dilation=self.dilation)


if __name__ == "__main__":
    key = jax.random.PRNGKey(0)
    B, C, H, W = 2, 4, 16, 16
    O, K = 8, 3
    x = jax.random.normal(key, (B, C, H, W), dtype=jnp.float32)

    conv = RobustLearnConv2dPallas(C, O, K, stride=1, padding=1,
                                   key=jax.random.PRNGKey(42))
    out = jax.block_until_ready(conv(x))
    assert out.shape == (B, O, H, W), out.shape

    dn = ("NCHW", "OIHW", "NCHW")
    # Tight check against a conv on the same bf16-quantized operands (f32 accum).
    xq = x.astype(jnp.bfloat16).astype(jnp.float32)
    wq = conv.weight.astype(jnp.bfloat16).astype(jnp.float32)
    ref_q = lax.conv_general_dilated(xq, wq, (1, 1), [(1, 1), (1, 1)],
                                     dimension_numbers=dn,
                                     precision=lax.Precision.HIGHEST)
    assert jnp.allclose(out, ref_q, atol=2e-3, rtol=2e-3), \
        float(jnp.max(jnp.abs(out - ref_q)))

    # Loose check against the full-f32 reference (bf16 operand cast in kernel).
    ref = lax.conv_general_dilated(x, conv.weight, (1, 1), [(1, 1), (1, 1)],
                                   dimension_numbers=dn,
                                   precision=lax.Precision.HIGHEST)
    assert jnp.allclose(out, ref, atol=5e-2, rtol=5e-2), \
        float(jnp.max(jnp.abs(out - ref)))

    print("KERNEL_OK")
</pallas_src>

<mosaic_0001>
module attributes {stable_mosaic.version = 11 : i64} {
  func.func @kernel(%arg0: i32, %arg1: i32, %arg2: memref<8x36xbf16, #tpu.memory_space<vmem>>, %arg3: memref<1x4x432xbf16, #tpu.memory_space<vmem>>, %arg4: memref<1x8x384xf32, #tpu.memory_space<vmem>>, %arg5: memref<36x384xbf16, #tpu.memory_space<vmem>>) attributes {dimension_semantics = [#tpu.dimension_semantics<parallel>, #tpu.dimension_semantics<arbitrary>], iteration_bounds = array<i64: 2, 1>, scalar_prefetch = 0 : i64, scratch_operands = 1 : i64, tpu.core_type = #tpu.core_type<tc>, window_params = [{transform_indices = @transform_0, window_bounds = array<i64: 8, 36>}, {transform_indices = @transform_1, window_bounds = array<i64: 1, 4, 432>}, {transform_indices = @transform_2, window_bounds = array<i64: 1, 8, 384>}]} {
    %c0_i32 = arith.constant 0 : i32
    %0 = arith.cmpi eq, %arg1, %c0_i32 : i32
    %1 = arith.extui %0 : i1 to i32
    %c0_i32_0 = arith.constant 0 : i32
    %2 = arith.cmpi ne, %1, %c0_i32_0 : i32
    scf.if %2 {
      %c0_7 = arith.constant 0 : index
      %c0_8 = arith.constant 0 : index
      %c0_9 = arith.constant 0 : index
      %9 = vector.load %arg3[%c0_7, %c0_8, %c0_9] : memref<1x4x432xbf16, #tpu.memory_space<vmem>>, vector<1x4x384xbf16>
      %10 = vector.shape_cast %9 : vector<1x4x384xbf16> to vector<4x384xbf16>
      %c0_10 = arith.constant 0 : index
      %c0_11 = arith.constant 0 : index
      %11 = vector.load %arg5[%c0_10, %c0_11] : memref<36x384xbf16, #tpu.memory_space<vmem>>, vector<4x384xbf16>
      tpu.vector_store %arg5[%c0_10, %c0_11], %10 {strides = array<i32>} : memref<36x384xbf16, #tpu.memory_space<vmem>>, vector<4x384xbf16>,
      %c0_12 = arith.constant 0 : index
      %c0_13 = arith.constant 0 : index
      %c1 = arith.constant 1 : index
      %12 = vector.load %arg3[%c0_12, %c0_13, %c1] : memref<1x4x432xbf16, #tpu.memory_space<vmem>>, vector<1x4x384xbf16>
      %13 = vector.shape_cast %12 : vector<1x4x384xbf16> to vector<4x384xbf16>
      %c4 = arith.constant 4 : index
      %c0_14 = arith.constant 0 : index
      %14 = vector.load %arg5[%c4, %c0_14] : memref<36x384xbf16, #tpu.memory_space<vmem>>, vector<4x384xbf16>
      tpu.vector_store %arg5[%c4, %c0_14], %13 {strides = array<i32>} : memref<36x384xbf16, #tpu.memory_space<vmem>>, vector<4x384xbf16>,
      %c0_15 = arith.constant 0 : index
      %c0_16 = arith.constant 0 : index
      %c2 = arith.constant 2 : index
      %15 = vector.load %arg3[%c0_15, %c0_16, %c2] : memref<1x4x432xbf16, #tpu.memory_space<vmem>>, vector<1x4x384xbf16>
      %16 = vector.shape_cast %15 : vector<1x4x384xbf16> to vector<4x384xbf16>
      %c8 = arith.constant 8 : index
      %c0_17 = arith.constant 0 : index
      %17 = vector.load %arg5[%c8, %c0_17] : memref<36x384xbf16, #tpu.memory_space<vmem>>, vector<4x384xbf16>
      tpu.vector_store %arg5[%c8, %c0_17], %16 {strides = array<i32>} : memref<36x384xbf16, #tpu.memory_space<vmem>>, vector<4x384xbf16>,
      %c0_18 = arith.constant 0 : index
      %c0_19 = arith.constant 0 : index
      %c18 = arith.constant 18 : index
      %18 = vector.load %arg3[%c0_18, %c0_19, %c18] : memref<1x4x432xbf16, #tpu.memory_space<vmem>>, vector<1x4x384xbf16>
      %19 = vector.shape_cast %18 : vector<1x4x384xbf16> to vector<4x384xbf16>
      %c12 = arith.constant 12 : index
      %c0_20 = arith.constant 0 : index
      %20 = vector.load %arg5[%c12, %c0_20] : memref<36x384xbf16, #tpu.memory_space<vmem>>, vector<4x384xbf16>
      tpu.vector_store %arg5[%c12, %c0_20], %19 {strides = array<i32>} : memref<36x384xbf16, #tpu.memory_space<vmem>>, vector<4x384xbf16>,
      %c0_21 = arith.constant 0 : index
      %c0_22 = arith.constant 0 : index
      %c19 = arith.constant 19 : index
      %21 = vector.load %arg3[%c0_21, %c0_22, %c19] : memref<1x4x432xbf16, #tpu.memory_space<vmem>>, vector<1x4x384xbf16>
      %22 = vector.shape_cast %21 : vector<1x4x384xbf16> to vector<4x384xbf16>
      %c16 = arith.constant 16 : index
      %c0_23 = arith.constant 0 : index
      %23 = vector.load %arg5[%c16, %c0_23] : memref<36x384xbf16, #tpu.memory_space<vmem>>, vector<4x384xbf16>
      tpu.vector_store %arg5[%c16, %c0_23], %22 {strides = array<i32>} : memref<36x384xbf16, #tpu.memory_space<vmem>>, vector<4x384xbf16>,
      %c0_24 = arith.constant 0 : index
      %c0_25 = arith.constant 0 : index
      %c20 = arith.constant 20 : index
      %24 = vector.load %arg3[%c0_24, %c0_25, %c20] : memref<1x4x432xbf16, #tpu.memory_space<vmem>>, vector<1x4x384xbf16>
      %25 = vector.shape_cast %24 : vector<1x4x384xbf16> to vector<4x384xbf16>
      %c20_26 = arith.constant 20 : index
      %c0_27 = arith.constant 0 : index
      %26 = vector.load %arg5[%c20_26, %c0_27] : memref<36x384xbf16, #tpu.memory_space<vmem>>, vector<4x384xbf16>
      tpu.vector_store %arg5[%c20_26, %c0_27], %25 {strides = array<i32>} : memref<36x384xbf16, #tpu.memory_space<vmem>>, vector<4x384xbf16>,
      %c0_28 = arith.constant 0 : index
      %c0_29 = arith.constant 0 : index
      %c36 = arith.constant 36 : index
      %27 = vector.load %arg3[%c0_28, %c0_29, %c36] : memref<1x4x432xbf16, #tpu.memory_space<vmem>>, vector<1x4x384xbf16>
      %28 = vector.shape_cast %27 : vector<1x4x384xbf16> to vector<4x384xbf16>
      %c24 = arith.constant 24 : index
      %c0_30 = arith.constant 0 : index
      %29 = vector.load %arg5[%c24, %c0_30] : memref<36x384xbf16, #tpu.memory_space<vmem>>, vector<4x384xbf16>
      tpu.vector_store %arg5[%c24, %c0_30], %28 {strides = array<i32>} : memref<36x384xbf16, #tpu.memory_space<vmem>>, vector<4x384xbf16>,
      %c0_31 = arith.constant 0 : index
      %c0_32 = arith.constant 0 : index
      %c37 = arith.constant 37 : index
      %30 = vector.load %arg3[%c0_31, %c0_32, %c37] : memref<1x4x432xbf16, #tpu.memory_space<vmem>>, vector<1x4x384xbf16>
      %31 = vector.shape_cast %30 : vector<1x4x384xbf16> to vector<4x384xbf16>
      %c28 = arith.constant 28 : index
      %c0_33 = arith.constant 0 : index
      %32 = vector.load %arg5[%c28, %c0_33] : memref<36x384xbf16, #tpu.memory_space<vmem>>, vector<4x384xbf16>
      tpu.vector_store %arg5[%c28, %c0_33], %31 {strides = array<i32>} : memref<36x384xbf16, #tpu.memory_space<vmem>>, vector<4x384xbf16>,
      %c0_34 = arith.constant 0 : index
      %c0_35 = arith.constant 0 : index
      %c38 = arith.constant 38 : index
      %33 = vector.load %arg3[%c0_34, %c0_35, %c38] : memref<1x4x432xbf16, #tpu.memory_space<vmem>>, vector<1x4x384xbf16>
      %34 = vector.shape_cast %33 : vector<1x4x384xbf16> to vector<4x384xbf16>
      %c32 = arith.constant 32 : index
      %c0_36 = arith.constant 0 : index
      %35 = vector.load %arg5[%c32, %c0_36] : memref<36x384xbf16, #tpu.memory_space<vmem>>, vector<4x384xbf16>
      tpu.vector_store %arg5[%c32, %c0_36], %34 {strides = array<i32>} : memref<36x384xbf16, #tpu.memory_space<vmem>>, vector<4x384xbf16>,
    } else {
    }
    %c0 = arith.constant 0 : index
    %c0_1 = arith.constant 0 : index
    %3 = vector.load %arg2[%c0, %c0_1] : memref<8x36xbf16, #tpu.memory_space<vmem>>, vector<8x36xbf16>
    %c0_2 = arith.constant 0 : index
    %c0_3 = arith.constant 0 : index
    %4 = vector.load %arg5[%c0_2, %c0_3] : memref<36x384xbf16, #tpu.memory_space<vmem>>, vector<36x384xbf16>
    %cst = arith.constant dense<0.000000e+00> : vector<8x384xf32>
    %5 = tpu.matmul %3, %4, %cst {dimension_numbers = #tpu.dot_dimension_numbers<[1], [0], [0], [1], [0, 0, 1, 1], [], []>} : vector<8x36xbf16>, vector<36x384xbf16>, vector<8x384xf32> -> vector<8x384xf32>
    %c0_4 = arith.constant 0 : index
    %c0_5 = arith.constant 0 : index
    %c0_6 = arith.constant 0 : index
    %6 = vector.load %arg4[%c0_4, %c0_5, %c0_6] : memref<1x8x384xf32, #tpu.memory_space<vmem>>, vector<1x8x384xf32>
    %7 = vector.shape_cast %6 : vector<1x8x384xf32> to vector<8x384xf32>
    %8 = vector.shape_cast %5 : vector<8x384xf32> to vector<1x8x384xf32>
    tpu.vector_store %arg4[%c0_4, %c0_5, %c0_6], %8 {strides = array<i32>} : memref<1x8x384xf32, #tpu.memory_space<vmem>>, vector<1x8x384xf32>,
    return
  }
  func.func @transform_0(%arg0: i32, %arg1: i32) -> (i32, i32) {
    %c0_i32 = arith.constant 0 : i32
    %c0_i32_0 = arith.constant 0 : i32
    return %arg1, %c0_i32 : i32, i32
  }
  func.func @transform_1(%arg0: i32, %arg1: i32) -> (i32, i32, i32) {
    %c0_i32 = arith.constant 0 : i32
    %c0_i32_0 = arith.constant 0 : i32
    %c0_i32_1 = arith.constant 0 : i32
    return %arg0, %c0_i32, %c0_i32_0 : i32, i32, i32
  }
  func.func @transform_2(%arg0: i32, %arg1: i32) -> (i32, i32, i32) {
    %c0_i32 = arith.constant 0 : i32
    %c0_i32_0 = arith.constant 0 : i32
    return %arg0, %arg1, %c0_i32 : i32, i32, i32
  }
}

</mosaic_0001>

<llo_original>
// kernel: robust_conv2d.1
$region0: #{robust_conv2d.1}
  #allocation0 [shape = 'u32[]', space=smem, size = 0x4, offset = 0x4, fixed_abs, tag = 'smem constant byte address 0x4 - core index']
  #allocation1 [shape = 'u32[144,128]{1,0:T(1,128)}', space=vmem, size = 0x12000, scoped, tag = 'internal scratch']
  #allocation2 [shape = 'bf16[36,384]{1,0:T(8,128)(2,1)}', space=vmem, size = 0x7800, scoped, tag = 'scratch operand']
  %s0 = inlined_call_operand.vmem [shape: bf16[8,36], index: 0, kind: input, shape index: {}]
  %s1 = inlined_call_operand.vmem [shape: bf16[2,4,432], index: 1, kind: input, shape index: {}]
  %s2 = inlined_call_operand.vmem [shape: f32[2,8,384], index: 2, kind: output, shape index: {}]
  %s3 = sld [smem:[#allocation0]]
  $region45: #{robust_conv2d.1} parent=0
    _
  %s5 = ssub.s32 1, %s3
  %s6 = scalar_select 0, %s5, %s3
  loop: start=0, step=1, limit=4
  $region2: #{robust_conv2d.1} parent=0 // loop_pre_header
    _
  $region3: #{robust_conv2d.1} parent=0 // loop_header
    %s8 = sphi 0, %s12
    %p9 = scmp.ge.s32.totalorder %s8, 4
    %s15 = sphi 0, %s27
    %s16 = sphi 0, %s23
    %s17 = sphi 0, %s15
    %s18 = sphi 0, %s16
    %s19 = sphi 0, %s17
    %s20 = sphi 0, %s18
    %s30 = sphi 0, %s32
    %s33 = sphi 0, %s30
    %s34 = sphi 0, %s33
    %s50 = sphi 0, %s34
    %s56 = sphi 0, %s58
    %s59 = sphi 0, %s56
    %s60 = sphi 0, %s59
    %s76 = sphi 0, %s60
    %s84 = sphi 0, %s86
    %s87 = sphi 0, %s84
    %s88 = sphi 0, %s87
    %s104 = sphi 0, %s88
  $region4: #{robust_conv2d.1} parent=0 // loop_header_branch
    %11 = sbr.rel (%p9) target = $region8
  $region5: #{robust_conv2d.1} parent=0 // loop_body
    %s13 = ssub.s32 %s8, 1
    %s14 = ssub.s32 %s8, 2
    %s21 = sadd.s32 1, %s16
    %p22 = scmp.ge.s32.totalorder %s21, 1
    %s23 = scalar_select %p22, 0, %s21
    %s24 = sadd.s32 1, %s15
    %s25 = scalar_select %p22, %s24, %s15
    %p26 = scmp.ge.s32.totalorder %s25, 2
    %s27 = scalar_select %p26, 0, %s25
    %s28 = ssub.s32 %s16, %s23
    %p29 = scmp.eq.s32.totalorder %s28, 0
    %s31 = sadd.s32 %s30, 1
    %s32 = scalar_select %p29, %s30, %s31
    %p35 = pneg %p29
    %p36 = scmp.eq.s32.totalorder %s8, 1
    %p37 = por %p35, %p36
    %p38 = scmp.ne.s32.totalorder %s30, %s33
    %p39 = scmp.eq.s32.totalorder %s8, 0
    %p40 = por %p38, %p39
    %p41 = scmp.ne.s32.totalorder %s30, %s33
    %p42 = scmp.eq.s32.totalorder %s13, 1
    %p43 = por %p41, %p42
    %p44 = scmp.ne.s32.totalorder %s33, %s34
    %p45 = scmp.eq.s32.totalorder %s13, 0
    %p46 = por %p44, %p45
    %p47 = scmp.ne.s32.totalorder %s33, %s34
    %p48 = scmp.eq.s32.totalorder %s14, 1
    %p49 = por %p47, %p48
    %p51 = scmp.ne.s32.totalorder %s34, %s50
    %p52 = scmp.eq.s32.totalorder %s14, 0
    %p53 = por %p51, %p52
    %s54 = ssub.s32 %s15, %s27
    %p55 = scmp.eq.s32.totalorder %s54, 0
    %s57 = sadd.s32 %s56, 1
    %s58 = scalar_select %p55, %s56, %s57
    %p61 = pneg %p55
    %p62 = scmp.eq.s32.totalorder %s8, 1
    %p63 = por %p61, %p62
    %p64 = scmp.ne.s32.totalorder %s56, %s59
    %p65 = scmp.eq.s32.totalorder %s8, 0
    %p66 = por %p64, %p65
    %p67 = scmp.ne.s32.totalorder %s56, %s59
    %p68 = scmp.eq.s32.totalorder %s13, 1
    %p69 = por %p67, %p68
    %p70 = scmp.ne.s32.totalorder %s59, %s60
    %p71 = scmp.eq.s32.totalorder %s13, 0
    %p72 = por %p70, %p71
    %p73 = scmp.ne.s32.totalorder %s59, %s60
    %p74 = scmp.eq.s32.totalorder %s14, 1
    %p75 = por %p73, %p74
    %p77 = scmp.ne.s32.totalorder %s60, %s76
    %p78 = scmp.eq.s32.totalorder %s14, 0
    %p79 = por %p77, %p78
    %s80 = ssub.s32 %s15, %s27
    %s81 = ssub.s32 %s16, %s23
    %s82 = sor.u32 %s80, %s81
    %p83 = scmp.eq.s32.totalorder %s82, 0
    %s85 = sadd.s32 %s84, 1
    %s86 = scalar_select %p83, %s84, %s85
    %p89 = pneg %p83
    %p90 = scmp.eq.s32.totalorder %s8, 1
    %p91 = por %p89, %p90
    %p92 = scmp.ne.s32.totalorder %s84, %s87
    %p93 = scmp.eq.s32.totalorder %s8, 0
    %p94 = por %p92, %p93
    %p95 = scmp.ne.s32.totalorder %s84, %s87
    %p96 = scmp.eq.s32.totalorder %s13, 1
    %p97 = por %p95, %p96
    %p98 = scmp.ne.s32.totalorder %s87, %s88
    %p99 = scmp.eq.s32.totalorder %s13, 0
    %p100 = por %p98, %p99
    %p101 = scmp.ne.s32.totalorder %s87, %s88
    %p102 = scmp.eq.s32.totalorder %s14, 1
    %p103 = por %p101, %p102
    %p105 = scmp.ne.s32.totalorder %s88, %s104
    %p106 = scmp.eq.s32.totalorder %s14, 0
    %p107 = por %p105, %p106
    %p108 = scmp.le.s32.totalorder 1, %s8
    %p109 = scmp.lt.s32.totalorder %s8, 3
    %p110 = pnand %p108, %p109
    %p111 = pneg %p110
    // Predicated region
    $region9: #{robust_conv2d.1} parent=5 // pred_check
      _
    $region10: #{robust_conv2d.1} parent=5 // pred_check_branch
      %113 = sbr.rel (%p110) target = $region12
    $region11: #{robust_conv2d.1} parent=5 // pred_region
      %s114 = ssub.s32 %s8, 1
      // Predicated region
      $region13: #{robust_conv2d.1} parent=11 // pred_check
        %p115 = pneg %p46
      $region14: #{robust_conv2d.1} parent=11 // pred_check_branch
        %117 = sbr.rel (%p115) target = $region16
      $region15: #{robust_conv2d.1} parent=11 // pred_region
        %p118 = scmp.lt.s32.totalorder %s18, 0
        %s119 = scalar_select %p118, %s18, 0
        %s120 = smul.addr %s119, 4
        %s121 = scalar_lea.vmem %s0, %s120
      $region16: #{robust_conv2d.1} parent=11 // pred_fallthru
        _
    $region12: #{robust_conv2d.1} parent=5 // pred_fallthru
      _
    %p122 = scmp.lt.s32.totalorder %s8, 2
    // Predicated region
    $region17: #{robust_conv2d.1} parent=5 // pred_check
      %p123 = pneg %p122
    $region18: #{robust_conv2d.1} parent=5 // pred_check_branch
      %125 = sbr.rel (%p123) target = $region20
    $region19: #{robust_conv2d.1} parent=5 // pred_region
      // Predicated region
      $region21: #{robust_conv2d.1} parent=19 // pred_check
        %p126 = pneg %p66
      $region22: #{robust_conv2d.1} parent=19 // pred_check_branch
        %128 = sbr.rel (%p126) target = $region24
      $region23: #{robust_conv2d.1} parent=19 // pred_region
        %p129 = scmp.lt.s32.totalorder %s15, 1
        %s130 = scalar_select %p129, %s15, 1
        %s131 = smul.addr %s130, 4
        %s132 = smul.addr %s131, 2
        %s133 = scalar_lea.vmem %s1, %s132
      $region24: #{robust_conv2d.1} parent=19 // pred_fallthru
        _
    $region20: #{robust_conv2d.1} parent=5 // pred_fallthru
      _
    %p134 = scmp.le.s32.totalorder 1, %s8
    %p135 = scmp.lt.s32.totalorder %s8, 3
    %p136 = pnand %p134, %p135
    %p137 = pneg %p136
    // Predicated region
    $region25: #{robust_conv2d.1} parent=5 // pred_check
      _
    $region26: #{robust_conv2d.1} parent=5 // pred_check_branch
      %139 = sbr.rel (%p136) target = $region28
    $region27: #{robust_conv2d.1} parent=5 // pred_region
      %s140 = ssub.s32 %s8, 1
      %p141 = scmp.lt.s32.totalorder %s18, 0
      %s142 = scalar_select %p141, %s18, 0
      %s143 = smul.addr %s142, 4
      %s144 = scalar_lea.vmem %s0, %s143
      %p145 = pneg %p46
      %p146 = pneg %p43
      %p147 = scmp.lt.s32.totalorder %s17, 1
      %s148 = scalar_select %p147, %s17, 1
      %s149 = smul.addr %s148, 4
      %s150 = smul.addr %s149, 2
      %s151 = scalar_lea.vmem %s1, %s150
      %p152 = pneg %p72
      %p153 = pneg %p69
      %p154 = pneg %p100
      %p155 = pneg %p97
      %p156 = scmp.lt.s32.totalorder %s17, 1
      %s157 = scalar_select %p156, %s17, 1
      %p158 = scmp.lt.s32.totalorder %s18, 0
      %s159 = scalar_select %p158, %s18, 0
      %s160 = smul.addr %s159, 3
      %s161 = smul.addr %s157, 3
      %s162 = sadd.s32 %s160, %s161
      %s163 = smul.addr %s162, 8
      %s164 = scalar_lea.vmem %s2, %s163
      %p165 = scmp.lt.s32.totalorder %s18, 0
      %s166 = scalar_select %p165, %s18, 0
      %s167 = smul.addr %s166, 4
      %s168 = scalar_lea.vmem %s0, %s167
      %p169 = scmp.lt.s32.totalorder %s17, 1
      %s170 = scalar_select %p169, %s17, 1
      %s171 = smul.addr %s170, 4
      %s172 = smul.addr %s171, 2
      %s173 = scalar_lea.vmem %s1, %s172
      %p174 = scmp.lt.s32.totalorder %s17, 1
      %s175 = scalar_select %p174, %s17, 1
      %p176 = scmp.lt.s32.totalorder %s18, 0
      %s177 = scalar_select %p176, %s18, 0
      %s178 = smul.addr %s177, 3
      %s179 = smul.addr %s175, 3
      %s180 = sadd.s32 %s178, %s179
      %s181 = smul.addr %s180, 8
      %s182 = scalar_lea.vmem %s2, %s181
      %p184 = scmp.eq.s32.totalorder %s18, 0
      // Predicated region
      $region29: #{robust_conv2d.1} parent=27 // pred_check
        %p185 = pneg %p184
      $region30: #{robust_conv2d.1} parent=27 // pred_check_branch
        %187 = sbr.rel (%p185) target = $region32
      $region31: #{robust_conv2d.1} parent=27 // pred_region
        %v188 = vld [vmem:[%s173] sm:$0x3f]
        %v190 = vcombine.high %v188, %v188
        %v192 = vunpack.c.l.s4 1983009808
        %v193 = vunpack.c.0.s8 %v192
        %v194 = vlaneseq
        %v195 = vshrl.u32 %v194, 7
        %v196 = vsub.s32 %v193, %v195
        %v197 = vrot.slane %v188, %v196
        %v199 = vunpack.c.l.s4 1983009808
        %v200 = vunpack.c.0.s8 %v199
        %v201 = vlaneseq
        %v202 = vshrl.u32 %v201, 7
        %v203 = vsub.s32 %v200, %v202
        %v204 = vrot.slane %v190, %v203
        %207 = vst [vmem:[#allocation2] sm:$0x33] %v197
        %208 = vst [vmem:[#allocation2 + $0x8] sm:$0x3] %v204
        %v209 = vld [vmem:[%s173] sm:$0xff]
        %v211 = vcombine.low %v209, %v209
        %v213 = vunpack.c.l.s4 1983009808
        %v214 = vunpack.c.0.s8 %v213
        %v215 = vlaneseq
        %v216 = vshrl.u32 %v215, 7
        %v217 = vsub.s32 %v214, %v216
        %v218 = vrot.slane %v211, %v217
        %v220 = vunpack.c.l.s4 1983009808
        %v221 = vunpack.c.0.s8 %v220
        %v222 = vlaneseq
        %v223 = vshrl.u32 %v222, 7
        %v224 = vsub.s32 %v221, %v223
        %v225 = vrot.slane %v209, %v224
        %226 = vrot.lane.b32.xlu0 %v218, 127
        %v227 = vpop.permute.xlu0 %226
        %228 = vrot.lane.b32.xlu0 %v225, 127
        %v229 = vpop.permute.xlu0 %228
        %v230 = vrot.slane %v227, 4
        %v231 = vrot.slane %v229, 4
        %vm232 = vcmask 1043456
        %v233 = vsel %vm232, %v230, %v231
        %vm234 = vcmask 1039360
        %v235 = vsel %vm234, %v227, %v233
        %v236 = vsel %vm234, %v229, %v231
        %239 = vst [vmem:[#allocation2] sm:$0xcc] %v235
        %240 = vst [vmem:[#allocation2 + $0x8] sm:$0xc] %v236
        %v241 = vld [vmem:[%s173] sm:$0xff]
        %v243 = vcombine.high %v241, %v241
        %v245 = vunpack.c.l.s4 1983009808
        %v246 = vunpack.c.0.s8 %v245
        %v247 = vlaneseq
        %v248 = vshrl.u32 %v247, 7
        %v249 = vsub.s32 %v246, %v248
        %v250 = vrot.slane %v241, %v249
        %v252 = vunpack.c.l.s4 1983009808
        %v253 = vunpack.c.0.s8 %v252
        %v254 = vlaneseq
        %v255 = vshrl.u32 %v254, 7
        %v256 = vsub.s32 %v253, %v255
        %v257 = vrot.slane %v243, %v256
        %258 = vrot.lane.b32.xlu0 %v250, 126
        %v259 = vpop.permute.xlu0 %258
        %260 = vrot.lane.b32.xlu0 %v257, 126
        %v261 = vpop.permute.xlu0 %260
        %v262 = vrot.slane %v259, 4
        %v263 = vrot.slane %v261, 4
        %v264 = vsel %vm232, %v262, %v263
        %vm265 = vcmask 1031168
        %v266 = vsel %vm265, %v259, %v264
        %v267 = vsel %vm265, %v261, %v263
        %270 = vst [vmem:[#allocation2 + $0xc] sm:$0x33] %v266
        %271 = vst [vmem:[#allocation2 + $0x14] sm:$0x3] %v267
        %v272 = vld [vmem:[%s173] sm:$0xff]
        %v274 = vcombine.low %v272, %v272
        %v276 = vunpack.c.l.s4 1983009808
        %v277 = vunpack.c.0.s8 %v276
        %v278 = vlaneseq
        %v279 = vshrl.u32 %v278, 7
        %v280 = vsub.s32 %v277, %v279
        %v281 = vrot.slane %v274, %v280
        %v283 = vunpack.c.l.s4 1983009808
        %v284 = vunpack.c.0.s8 %v283
        %v285 = vlaneseq
        %v286 = vshrl.u32 %v285, 7
        %v287 = vsub.s32 %v284, %v286
        %v288 = vrot.slane %v272, %v287
        %289 = vrot.lane.b32.xlu0 %v281, 110
        %v290 = vpop.permute.xlu0 %289
        %291 = vrot.lane.b32.xlu0 %v288, 110
        %v292 = vpop.permute.xlu0 %291
        %v293 = vrot.slane %v290, 4
        %v294 = vrot.slane %v292, 4
        %v295 = vsel %vm232, %v293, %v294
        %vm296 = vcmask 900096
        %v297 = vsel %vm296, %v290, %v295
        %v298 = vsel %vm296, %v292, %v294
        %301 = vst [vmem:[#allocation2 + $0xc] sm:$0xcc] %v297
        %302 = vst [vmem:[#allocation2 + $0x14] sm:$0xc] %v298
        %v303 = vld [vmem:[%s173] sm:$0xff]
        %v305 = vcombine.high %v303, %v303
        %v307 = vunpack.c.l.s4 1983009808
        %v308 = vunpack.c.0.s8 %v307
        %v309 = vlaneseq
        %v310 = vshrl.u32 %v309, 7
        %v311 = vsub.s32 %v308, %v310
        %v312 = vrot.slane %v303, %v311
        %v314 = vunpack.c.l.s4 1983009808
        %v315 = vunpack.c.0.s8 %v314
        %v316 = vlaneseq
        %v317 = vshrl.u32 %v316, 7
        %v318 = vsub.s32 %v315, %v317
        %v319 = vrot.slane %v305, %v318
        %320 = vrot.lane.b32.xlu0 %v312, 109
        %v321 = vpop.permute.xlu0 %320
        %322 = vrot.lane.b32.xlu0 %v319, 109
        %v323 = vpop.permute.xlu0 %322
        %v324 = vrot.slane %v321, 4
        %v325 = vrot.slane %v323, 4
        %v326 = vsel %vm232, %v324, %v325
        %vm327 = vcmask 891904
        %v328 = vsel %vm327, %v321, %v326
        %v329 = vsel %vm327, %v323, %v325
        %332 = vst [vmem:[#allocation2 + $0x18] sm:$0x33] %v328
        %333 = vst [vmem:[#allocation2 + $0x20] sm:$0x3] %v329
        %v334 = vld [vmem:[%s173] sm:$0xff]
        %v336 = vcombine.low %v334, %v334
        %v338 = vunpack.c.l.s4 1983009808
        %v339 = vunpack.c.0.s8 %v338
        %v340 = vlaneseq
        %v341 = vshrl.u32 %v340, 7
        %v342 = vsub.s32 %v339, %v341
        %v343 = vrot.slane %v336, %v342
        %v345 = vunpack.c.l.s4 1983009808
        %v346 = vunpack.c.0.s8 %v345
        %v347 = vlaneseq
        %v348 = vshrl.u32 %v347, 7
        %v349 = vsub.s32 %v346, %v348
        %v350 = vrot.slane %v334, %v349
        %351 = vrot.lane.b32.xlu0 %v343, 108
        %v352 = vpop.permute.xlu0 %351
        %353 = vrot.lane.b32.xlu0 %v350, 108
        %v354 = vpop.permute.xlu0 %353
        %v355 = vrot.slane %v352, 4
        %v356 = vrot.slane %v354, 4
        %v357 = vsel %vm232, %v355, %v356
        %vm358 = vcmask 883712
        %v359 = vsel %vm358, %v352, %v357
        %v360 = vsel %vm358, %v354, %v356
        %363 = vst [vmem:[#allocation2 + $0x18] sm:$0xcc] %v359
        %364 = vst [vmem:[#allocation2 + $0x20] sm:$0xc] %v360
        %v365 = vld [vmem:[%s173] sm:$0xff]
        %v367 = vcombine.high %v365, %v365
        %v369 = vunpack.c.l.s4 1983009808
        %v370 = vunpack.c.0.s8 %v369
        %v371 = vlaneseq
        %v372 = vshrl.u32 %v371, 7
        %v373 = vsub.s32 %v370, %v372
        %v374 = vrot.slane %v365, %v373
        %v376 = vunpack.c.l.s4 1983009808
        %v377 = vunpack.c.0.s8 %v376
        %v378 = vlaneseq
        %v379 = vshrl.u32 %v378, 7
        %v380 = vsub.s32 %v377, %v379
        %v381 = vrot.slane %v367, %v380
        %382 = vrot.lane.b32.xlu0 %v374, 92
        %v383 = vpop.permute.xlu0 %382
        %384 = vrot.lane.b32.xlu0 %v381, 92
        %v385 = vpop.permute.xlu0 %384
        %v386 = vrot.slane %v383, 4
        %v387 = vrot.slane %v385, 4
        %v388 = vsel %vm232, %v386, %v387
        %vm389 = vcmask 752640
        %v390 = vsel %vm389, %v383, %v388
        %v391 = vsel %vm389, %v385, %v387
        %394 = vst [vmem:[#allocation2 + $0x24] sm:$0x33] %v390
        %395 = vst [vmem:[#allocation2 + $0x2c] sm:$0x3] %v391
        %v396 = vld [vmem:[%s173] sm:$0xff]
        %v398 = vcombine.low %v396, %v396
        %v400 = vunpack.c.l.s4 1983009808
        %v401 = vunpack.c.0.s8 %v400
        %v402 = vlaneseq
        %v403 = vshrl.u32 %v402, 7
        %v404 = vsub.s32 %v401, %v403
        %v405 = vrot.slane %v398, %v404
        %v407 = vunpack.c.l.s4 1983009808
        %v408 = vunpack.c.0.s8 %v407
        %v409 = vlaneseq
        %v410 = vshrl.u32 %v409, 7
        %v411 = vsub.s32 %v408, %v410
        %v412 = vrot.slane %v396, %v411
        %413 = vrot.lane.b32.xlu0 %v405, 91
        %v414 = vpop.permute.xlu0 %413
        %415 = vrot.lane.b32.xlu0 %v412, 91
        %v416 = vpop.permute.xlu0 %415
        %v417 = vrot.slane %v414, 4
        %v418 = vrot.slane %v416, 4
        %v419 = vsel %vm232, %v417, %v418
        %vm420 = vcmask 744448
        %v421 = vsel %vm420, %v414, %v419
        %v422 = vsel %vm420, %v416, %v418
        %425 = vst [vmem:[#allocation2 + $0x24] sm:$0xcc] %v421
        %426 = vst [vmem:[#allocation2 + $0x2c] sm:$0xc] %v422
        %v427 = vld [vmem:[%s173] sm:$0xff]
        %v429 = vcombine.high %v427, %v427
        %v431 = vunpack.c.l.s4 1983009808
        %v432 = vunpack.c.0.s8 %v431
        %v433 = vlaneseq
        %v434 = vshrl.u32 %v433, 7
        %v435 = vsub.s32 %v432, %v434
        %v436 = vrot.slane %v427, %v435
        %v438 = vunpack.c.l.s4 1983009808
        %v439 = vunpack.c.0.s8 %v438
        %v440 = vlaneseq
        %v441 = vshrl.u32 %v440, 7
        %v442 = vsub.s32 %v439, %v441
        %v443 = vrot.slane %v429, %v442
        %444 = vrot.lane.b32.xlu0 %v436, 90
        %v445 = vpop.permute.xlu0 %444
        %446 = vrot.lane.b32.xlu0 %v443, 90
        %v447 = vpop.permute.xlu0 %446
        %v448 = vrot.slane %v445, 4
        %v449 = vrot.slane %v447, 4
        %v450 = vsel %vm232, %v448, %v449
        %vm451 = vcmask 736256
        %v452 = vsel %vm451, %v445, %v450
        %v453 = vsel %vm451, %v447, %v449
        %456 = vst [vmem:[#allocation2 + $0x30] sm:$0x33] %v452
        %457 = vst [vmem:[#allocation2 + $0x38] sm:$0x3] %v453
      $region32: #{robust_conv2d.1} parent=27 // pred_fallthru
        _
      %v458 = vld [vmem:[%s168] sm:$0xf]
      %v459 = vld [vmem:[#allocation2] sm:$0xff]
      %v460 = vld [vmem:[#allocation2 + $0x8] sm:$0xf]
      %v461 = vld [vmem:[#allocation2 + $0xc] sm:$0xff]
      %v462 = vld [vmem:[#allocation2 + $0x14] sm:$0xf]
      %v463 = vld [vmem:[#allocation2 + $0x18] sm:$0xff]
      %v464 = vld [vmem:[#allocation2 + $0x20] sm:$0xf]
      %v465 = vld [vmem:[#allocation2 + $0x24] sm:$0xff]
      %v466 = vld [vmem:[#allocation2 + $0x2c] sm:$0xf]
      %v467 = vld [vmem:[#allocation2 + $0x30] sm:$0x33]
      %v468 = vld [vmem:[#allocation2 + $0x38] sm:$0x3]
      %v479 = vunpack.c.l.b16 %v459
      %v480 = vunpack.c.h.b16 %v459
      %v481 = vunpack.c.l.b16 %v460
      %v482 = vunpack.c.l.b16 %v461
      %v483 = vunpack.c.h.b16 %v461
      %v484 = vunpack.c.l.b16 %v462
      %v485 = vunpack.c.l.b16 %v463
      %v486 = vunpack.c.h.b16 %v463
      %v487 = vunpack.c.l.b16 %v464
      %v488 = vunpack.c.l.b16 %v465
      %v489 = vunpack.c.h.b16 %v465
      %v490 = vunpack.c.l.b16 %v466
      %v491 = vunpack.c.l.b16 %v467
      %v492 = vunpack.c.h.b16 %v467
      %v493 = vunpack.c.l.b16 %v468
      %v494 = vpack.c.b16 %v482, %v479
      %v495 = vpack.c.b16 %v483, %v480
      %v496 = vpack.c.b16 %v484, %v481
      %v497 = vpack.c.b16 %v488, %v485
      %v498 = vpack.c.b16 %v489, %v486
      %v499 = vpack.c.b16 %v490, %v487
      %v500 = vpack.c.b16 %v491, %v491
      %v501 = vpack.c.b16 %v492, %v492
      %v502 = vpack.c.b16 %v493, %v493
      %vm509 = vcmask 293888
      %v511 = vsel %vm509, %v458, 0
      %vm513 = vcmask 1041408
      %v515 = vsel %vm513, %v500, 0
      %v518 = vsel %vm513, %v501, 0
      %v521 = vsel %vm513, %v502, 0
      %523 = vmatprep.subr.bf16.mxu0 0
      %524 = vmatpush1.bf16.msra.mxu0 0
      %525 = vmatprep.subr.bf16.mxu0 0
      %526 = vmatpush1.bf16.msra.mxu0 0
      %527 = vmatprep.subr.bf16.mxu0 0
      %528 = vmatpush1.bf16.msra.mxu0 0
      %529 = vmatprep.subr.bf16.mxu0 0
      %530 = vmatpush1.bf16.msra.mxu0 0
      %531 = vmatprep.subr.bf16.mxu0 0
      %532 = vmatpush1.bf16.msra.mxu0 0
      %533 = vmatprep.subr.bf16.mxu0 %v518
      %534 = vmatpush1.bf16.msra.mxu0 %v515
      %535 = vmatprep.subr.bf16.mxu0 %v498
      %536 = vmatpush1.bf16.msra.mxu0 %v497
      %537 = vmatprep.subr.bf16.mxu0 %v495
      %538 = vmatpush1.bf16.msra.mxu0 %v494
      %539 = vmatprep.subr.bf16.mxu0 0
      %540 = vmatpush2.bf16.msra.mxu0 0
      %541 = vmatprep.subr.bf16.mxu0 0
      %542 = vmatpush2.bf16.msra.mxu0 0
      %543 = vmatprep.subr.bf16.mxu0 0
      %544 = vmatpush2.bf16.msra.mxu0 0
      %545 = vmatprep.subr.bf16.mxu0 0
      %546 = vmatpush2.bf16.msra.mxu0 0
      %547 = vmatprep.subr.bf16.mxu0 0
      %548 = vmatpush2.bf16.msra.mxu0 0
      %549 = vmatprep.subr.bf16.mxu0 0
      %550 = vmatpush2.bf16.msra.mxu0 0
      %551 = vmatprep.subr.bf16.mxu0 0
      %552 = vmatpush2.bf16.msra.mxu0 0
      %553 = vmatprep.subr.bf16.mxu0 0
      %554 = vmatpush2.bf16.msra.mxu0 0
      %555 = vmatprep.mubr.bf16.mxu0 0
      %556 = vmatmul.mubr.bf16.gmra.mxu0 %v511
      %v557 = vpop.f32.mrf.mxu0
      %v558 = vadd.f32 0.0, %v557
      %v559 = vpop.f32.mrf.mxu0
      %v560 = vadd.f32 0.0, %v559
      %v561 = vpop.f32.mrf.mxu0
      %v562 = vpop.f32.mrf.mxu0
      %563 = vdwg.mxu0
      %564 = vmatprep.subr.bf16.mxu0 0
      %565 = vmatpush1.bf16.msra.mxu0 0
      %566 = vmatprep.subr.bf16.mxu0 0
      %567 = vmatpush1.bf16.msra.mxu0 0
      %568 = vmatprep.subr.bf16.mxu0 0
      %569 = vmatpush1.bf16.msra.mxu0 0
      %570 = vmatprep.subr.bf16.mxu0 0
      %571 = vmatpush1.bf16.msra.mxu0 0
      %572 = vmatprep.subr.bf16.mxu0 0
      %573 = vmatpush1.bf16.msra.mxu0 0
      %574 = vmatprep.subr.bf16.mxu0 0
      %575 = vmatpush1.bf16.msra.mxu0 %v521
      %576 = vmatprep.subr.bf16.mxu0 0
      %577 = vmatpush1.bf16.msra.mxu0 %v499
      %578 = vmatprep.subr.bf16.mxu0 0
      %579 = vmatpush1.bf16.msra.mxu0 %v496
      %580 = vmatprep.subr.bf16.mxu0 0
      %581 = vmatpush2.bf16.msra.mxu0 0
      %582 = vmatprep.subr.bf16.mxu0 0
      %583 = vmatpush2.bf16.msra.mxu0 0
      %584 = vmatprep.subr.bf16.mxu0 0
      %585 = vmatpush2.bf16.msra.mxu0 0
      %586 = vmatprep.subr.bf16.mxu0 0
      %587 = vmatpush2.bf16.msra.mxu0 0
      %588 = vmatprep.subr.bf16.mxu0 0
      %589 = vmatpush2.bf16.msra.mxu0 0
      %590 = vmatprep.subr.bf16.mxu0 0
      %591 = vmatpush2.bf16.msra.mxu0 0
      %592 = vmatprep.subr.bf16.mxu0 0
      %593 = vmatpush2.bf16.msra.mxu0 0
      %594 = vmatprep.subr.bf16.mxu0 0
      %595 = vmatpush2.bf16.msra.mxu0 0
      %596 = vmatprep.mubr.bf16.mxu0 0
      %597 = vmatmul.mubr.bf16.gmra.mxu0 %v511
      %v598 = vpop.f32.mrf.mxu0
      %v599 = vadd.f32 0.0, %v598
      %v600 = vpop.f32.mrf.mxu0
      %v601 = vpop.f32.mrf.mxu0
      %v602 = vpop.f32.mrf.mxu0
      %603 = vdwg.mxu0
      %604 = vst [vmem:[%s182] sm:$0xff] %v558
      %605 = vst [vmem:[%s182 + $0x8] sm:$0xff] %v560
      %606 = vst [vmem:[%s182 + $0x10] sm:$0xff] %v599
      %p607 = scmp.lt.s32.totalorder %s17, 1
      %s608 = scalar_select %p607, %s17, 1
      %p609 = scmp.lt.s32.totalorder %s18, 0
      %s610 = scalar_select %p609, %s18, 0
      %s611 = smul.addr %s610, 3
      %s612 = smul.addr %s608, 3
      %s613 = sadd.s32 %s611, %s612
      %s614 = smul.addr %s613, 8
      %s615 = scalar_lea.vmem %s2, %s614
      // Predicated region
      $region33: #{robust_conv2d.1} parent=27 // pred_check
        %p616 = pneg %p97
      $region34: #{robust_conv2d.1} parent=27 // pred_check_branch
        %618 = sbr.rel (%p616) target = $region36
      $region35: #{robust_conv2d.1} parent=27 // pred_region
        _
      $region36: #{robust_conv2d.1} parent=27 // pred_fallthru
        _
    $region28: #{robust_conv2d.1} parent=5 // pred_fallthru
      _
    %p619 = scmp.le.s32.totalorder 2, %s8
    // Predicated region
    $region37: #{robust_conv2d.1} parent=5 // pred_check
      %p620 = pneg %p619
    $region38: #{robust_conv2d.1} parent=5 // pred_check_branch
      %622 = sbr.rel (%p620) target = $region40
    $region39: #{robust_conv2d.1} parent=5 // pred_region
      %s623 = ssub.s32 %s8, 2
      // Predicated region
      $region41: #{robust_conv2d.1} parent=39 // pred_check
        %p624 = pneg %p103
      $region42: #{robust_conv2d.1} parent=39 // pred_check_branch
        %626 = sbr.rel (%p624) target = $region44
      $region43: #{robust_conv2d.1} parent=39 // pred_region
        %p627 = scmp.lt.s32.totalorder %s19, 1
        %s628 = scalar_select %p627, %s19, 1
        %p629 = scmp.lt.s32.totalorder %s20, 0
        %s630 = scalar_select %p629, %s20, 0
        %s631 = smul.addr %s630, 3
        %s632 = smul.addr %s628, 3
        %s633 = sadd.s32 %s631, %s632
        %s634 = smul.addr %s633, 8
        %s635 = scalar_lea.vmem %s2, %s634
      $region44: #{robust_conv2d.1} parent=39 // pred_fallthru
        _
    $region40: #{robust_conv2d.1} parent=5 // pred_fallthru
      _
  $region6: #{robust_conv2d.1} parent=0 // loop_footer
    %s12 = sadd.s32 1, %s8
  $region7: #{robust_conv2d.1} parent=0 // loop_footer_branch
    %7 = sbr.rel target = $region3
  $region8: #{robust_conv2d.1} parent=0 // loop_exit
    _

</llo_original>
